<compile_context>
chip_gen: v5e
topology: v5e:2x2
jax: 0.10.0
libtpu: 0.0.40
codegen_flags: <defaults>
</compile_context>

<pallas_src>
import functools

import jax
import jax.numpy as jnp
from jax.experimental import pallas as pl
from jax.experimental.pallas import tpu as pltpu

EPS = 1e-5
LANE = 128


def _round_up(x, m):
    return (x + m - 1) // m * m


def _pick_tile(f):
    """Largest of (512, 256, 128) dividing f (f is always a multiple of 128)."""
    for t in (512, 256, 128):
        if f % t == 0:
            return t
    return f


def _vmem_limit(need_bytes):
    """Generation-aware scoped-VMEM budget with ~15% headroom."""
    try:
        cap = int(pltpu.get_tpu_info().vmem_capacity_bytes)
    except Exception:
        cap = 64 * 1024 * 1024  # conservative fallback (v7x per-core VMEM)
    limit = int(need_bytes * 1.5) + (4 << 20)
    limit = max(limit, 32 * 1024 * 1024)
    return min(limit, int(cap * 0.85))


# ---------------------------------------------------------------------------
# Kernels
# ---------------------------------------------------------------------------

def _layer_kernel(x_ref, w_ref, p_ref, o_ref, *, n_real):
    """Fused Linear -> bias -> ReLU -> training-mode BatchNorm1d (one feature tile).

    x_ref: (N_pad, F_in) bf16      w_ref: (F_in, TILE) bf16
    p_ref: (3, TILE) f32, rows: 0=bias, 1=gamma, 2=beta
    o_ref: (N_pad, TILE) bf16
    """
    h = jnp.dot(x_ref[...], w_ref[...], preferred_element_type=jnp.float32)
    h = h + p_ref[0:1, :]
    h = jnp.maximum(h, 0.0)

    n_pad = h.shape[0]
    if n_real == n_pad:
        # Two-pass batch statistics (PyTorch biased variance).
        mu = jnp.mean(h, axis=0, keepdims=True)
        d = h - mu
        var = jnp.mean(d * d, axis=0, keepdims=True)
    else:
        # Padded batch rows are excluded from the statistics (masked two-pass),
        # so padding the batch never changes the result on real rows.
        inv_n = 1.0 / float(n_real)
        rows = jax.lax.broadcasted_iota(jnp.int32, h.shape, 0)
        mask = (rows < n_real).astype(jnp.float32)
        mu = jnp.sum(h * mask, axis=0, keepdims=True) * inv_n
        d = (h - mu) * mask
        var = jnp.sum(d * d, axis=0, keepdims=True) * inv_n

    scale = p_ref[1:2, :] * jax.lax.rsqrt(var + EPS)   # rsqrt -> EUP
    shift = p_ref[2:3, :] - mu * scale
    # bf16 output: cast fused into the BN affine store (halves inter-layer
    # activation traffic; next layer's MXU operand is already bf16).
    o_ref[...] = (h * scale + shift).astype(o_ref.dtype)


def _linear_kernel(x_ref, w_ref, b_ref, o_ref):
    """Final fc4: one lane-dense output tile, f32 result."""
    o_ref[...] = (
        jnp.dot(x_ref[...], w_ref[...], preferred_element_type=jnp.float32)
        + b_ref[...]
    )


# ---------------------------------------------------------------------------
# Per-layer pallas_call wrappers
# ---------------------------------------------------------------------------

def _run_layer(h, w, p, n_real):
    n_pad, f_in = h.shape
    f_out = w.shape[1]
    tile = _pick_tile(f_out)
    grid = (f_out // tile,)

    flops = 2 * n_pad * f_in * f_out
    bytes_accessed = h.size * 2 + w.size * 2 + p.size * 4 + n_pad * f_out * 2
    vmem_need = (2 * n_pad * f_in * 2       # resident bf16 activation (buffered)
                 + 2 * f_in * tile * 2      # double-buffered weight column tile
                 + 2 * 3 * tile * 4         # double-buffered packed params
                 + 2 * n_pad * tile * 2     # double-buffered bf16 output tile
                 + 4 * n_pad * tile * 4)    # f32 temporaries (h, h-mu, d*d, ...)

    return pl.pallas_call(
        functools.partial(_layer_kernel, n_real=n_real),
        grid=grid,
        in_specs=[
            pl.BlockSpec((n_pad, f_in), lambda j: (0, 0)),   # whole activation, resident
            pl.BlockSpec((f_in, tile), lambda j: (0, j)),    # weight column tile
            pl.BlockSpec((3, tile), lambda j: (0, j)),       # bias/gamma/beta tile
        ],
        out_specs=pl.BlockSpec((n_pad, tile), lambda j: (0, j)),
        out_shape=jax.ShapeDtypeStruct((n_pad, f_out), jnp.bfloat16),
        compiler_params=pltpu.CompilerParams(
            dimension_semantics=("parallel",),
            vmem_limit_bytes=_vmem_limit(vmem_need)),
        cost_estimate=pl.CostEstimate(
            flops=flops, transcendentals=f_out, bytes_accessed=bytes_accessed),
    )(h, w, p)


def _run_final(h, w, b):
    n_pad, f_in = h.shape
    f_out = w.shape[1]
    tile = _pick_tile(f_out)
    grid = (f_out // tile,)

    flops = 2 * n_pad * f_in * f_out
    bytes_accessed = h.size * 2 + w.size * 2 + b.size * 4 + n_pad * f_out * 4
    vmem_need = (2 * n_pad * f_in * 2 + 2 * f_in * tile * 2 + 2 * tile * 4
                 + 2 * n_pad * tile * 4 + 2 * n_pad * tile * 4)

    return pl.pallas_call(
        _linear_kernel,
        grid=grid,
        in_specs=[
            pl.BlockSpec((n_pad, f_in), lambda j: (0, 0)),
            pl.BlockSpec((f_in, tile), lambda j: (0, j)),
            pl.BlockSpec((1, tile), lambda j: (0, j)),
        ],
        out_specs=pl.BlockSpec((n_pad, tile), lambda j: (0, j)),
        out_shape=jax.ShapeDtypeStruct((n_pad, f_out), jnp.float32),
        compiler_params=pltpu.CompilerParams(
            dimension_semantics=("parallel",),
            vmem_limit_bytes=_vmem_limit(vmem_need)),
        cost_estimate=pl.CostEstimate(
            flops=flops, transcendentals=0, bytes_accessed=bytes_accessed),
    )(h, w, b)


# ---------------------------------------------------------------------------
# Public entry point
# ---------------------------------------------------------------------------

def mlp_decoder(x, params):
    """x: (N, in_dim) float32. params: dict of 2D float32 arrays (see init_params)."""
    n, in_dim = x.shape
    hidden = params["w1"].shape[1]
    out_dim = params["w3"].shape[1]
    binary = params["w4"].shape[1]

    n_pad = _round_up(max(n, 1), 8)
    in_p = _round_up(in_dim, LANE)
    hid_p = _round_up(hidden, LANE)
    out_p = _round_up(out_dim, LANE)
    bin_p = _round_up(binary, LANE)

    def pad2(a, r, c, dtype):
        a = a.astype(dtype)
        return jnp.pad(a, ((0, r - a.shape[0]), (0, c - a.shape[1])))

    # x enters the kernels already in bf16 (the MXU operand dtype) -> half the
    # input DMA and no in-kernel cast pass.  Zero-padded feature columns stay
    # exactly 0 through ReLU + BN because padded bias/gamma/beta are 0; padded
    # batch rows are masked out of the BN statistics inside the kernel.
    x_p = pad2(x, n_pad, in_p, jnp.bfloat16)

    w1 = pad2(params["w1"], in_p, hid_p, jnp.bfloat16)
    w2 = pad2(params["w2"], hid_p, hid_p, jnp.bfloat16)
    w3 = pad2(params["w3"], hid_p, out_p, jnp.bfloat16)
    w4 = pad2(params["w4"], out_p, bin_p, jnp.bfloat16)

    def pack(b, g, be, f):
        return pad2(jnp.concatenate([b, g, be], axis=0), 3, f, jnp.float32)

    p1 = pack(params["b1"], params["g1"], params["be1"], hid_p)
    p2 = pack(params["b2"], params["g2"], params["be2"], hid_p)
    p3 = pack(params["b3"], params["g3"], params["be3"], out_p)
    b4 = pad2(params["b4"], 1, bin_p, jnp.float32)

    h = _run_layer(x_p, w1, p1, n)
    h = _run_layer(h, w2, p2, n)
    h = _run_layer(h, w3, p3, n)
    out = _run_final(h, w4, b4)
    return out[:n, :binary]


# ---------------------------------------------------------------------------
# Parameter init + references
# ---------------------------------------------------------------------------

def init_params(key, in_dim, hidden_dim, out_dim, binary=1):
    """Deterministic synthetic init (PyTorch-like uniform for Linear, BN defaults)."""
    ks = jax.random.split(key, 8)

    def linear(kw, kb, fan_in, fan_out):
        bound = 1.0 / jnp.sqrt(fan_in)
        w = jax.random.uniform(kw, (fan_in, fan_out), jnp.float32, -bound, bound)
        b = jax.random.uniform(kb, (1, fan_out), jnp.float32, -bound, bound)
        return w, b

    w1, b1 = linear(ks[0], ks[1], in_dim, hidden_dim)
    w2, b2 = linear(ks[2], ks[3], hidden_dim, hidden_dim)
    w3, b3 = linear(ks[4], ks[5], hidden_dim, out_dim)
    w4, b4 = linear(ks[6], ks[7], out_dim, binary)

    ones = lambda f: jnp.ones((1, f), jnp.float32)
    zeros = lambda f: jnp.zeros((1, f), jnp.float32)
    return {
        "w1": w1, "b1": b1, "g1": ones(hidden_dim), "be1": zeros(hidden_dim),
        "w2": w2, "b2": b2, "g2": ones(hidden_dim), "be2": zeros(hidden_dim),
        "w3": w3, "b3": b3, "g3": ones(out_dim),    "be3": zeros(out_dim),
        "w4": w4, "b4": b4,
    }


def _bn_ref(h, g, be):
    mu = jnp.mean(h, axis=0, keepdims=True)
    var = jnp.mean((h - mu) ** 2, axis=0, keepdims=True)
    return (h - mu) * jax.lax.rsqrt(var + EPS) * g + be


def _reference_f32(x, p):
    """Pure-f32 PyTorch-semantics reference."""
    h = _bn_ref(jnp.maximum(x @ p["w1"] + p["b1"], 0.0), p["g1"], p["be1"])
    h = _bn_ref(jnp.maximum(h @ p["w2"] + p["b2"], 0.0), p["g2"], p["be2"])
    h = _bn_ref(jnp.maximum(h @ p["w3"] + p["b3"], 0.0), p["g3"], p["be3"])
    return h @ p["w4"] + p["b4"]


def _reference_bf16(x, p):
    """Reference with the kernel's exact dataflow: bf16 MXU operands, f32 BN, bf16 activations."""
    def dot(a_bf16, w):
        return jnp.dot(a_bf16, w.astype(jnp.bfloat16),
                       preferred_element_type=jnp.float32)
    h = x.astype(jnp.bfloat16)
    h = _bn_ref(jnp.maximum(dot(h, p["w1"]) + p["b1"], 0.0),
                p["g1"], p["be1"]).astype(jnp.bfloat16)
    h = _bn_ref(jnp.maximum(dot(h, p["w2"]) + p["b2"], 0.0),
                p["g2"], p["be2"]).astype(jnp.bfloat16)
    h = _bn_ref(jnp.maximum(dot(h, p["w3"]) + p["b3"], 0.0),
                p["g3"], p["be3"]).astype(jnp.bfloat16)
    return dot(h, p["w4"]) + p["b4"]


if __name__ == "__main__":
    key = jax.random.PRNGKey(0)
    k_x, k_p, k_x2 = jax.random.split(key, 3)

    N, IN_DIM, HIDDEN, OUT_DIM, BINARY = 8, 32, 32, 16, 1
    x = jax.random.normal(k_x, (N, IN_DIM), jnp.float32)
    params = init_params(k_p, IN_DIM, HIDDEN, OUT_DIM, BINARY)

    out = jax.block_until_ready(mlp_decoder(x, params))
    assert out.shape == (N, BINARY)

    # Tight check against a reference using identical bf16-MXU / bf16-activation math.
    ref_bf16 = _reference_bf16(x, params)
    assert jnp.allclose(out, ref_bf16, atol=5e-3, rtol=5e-3), (
        float(jnp.max(jnp.abs(out - ref_bf16))))

    # Loose sanity check against the pure-f32 PyTorch-semantics reference.
    ref_f32 = _reference_f32(x, params)
    assert jnp.max(jnp.abs(out - ref_f32)) < 0.12, (
        float(jnp.max(jnp.abs(out - ref_f32))))

    # Odd batch exercises the masked-BN path (N=5 is padded to 8 rows in-kernel;
    # statistics are still taken over the 5 real rows only).
    x_odd = jax.random.normal(k_x2, (5, IN_DIM), jnp.float32)
    out_odd = jax.block_until_ready(mlp_decoder(x_odd, params))
    assert out_odd.shape == (5, BINARY)
    ref_odd = _reference_bf16(x_odd, params)
    assert jnp.allclose(out_odd, ref_odd, atol=5e-3, rtol=5e-3), (
        float(jnp.max(jnp.abs(out_odd - ref_odd))))

    print("KERNEL_OK")
</pallas_src>

<mosaic_0001>
module attributes {stable_mosaic.version = 11 : i64} {
  func.func @_layer_kernel(%arg0: i32, %arg1: memref<8x128xbf16, #tpu.memory_space<vmem>>, %arg2: memref<128x128xbf16, #tpu.memory_space<vmem>>, %arg3: memref<3x128xf32, #tpu.memory_space<vmem>>, %arg4: memref<8x128xbf16, #tpu.memory_space<vmem>>) attributes {dimension_semantics = [#tpu.dimension_semantics<parallel>], iteration_bounds = array<i64: 1>, scalar_prefetch = 0 : i64, scratch_operands = 0 : i64, tpu.core_type = #tpu.core_type<tc>, window_params = [{pipeline_mode = #tpu.pipeline_mode<synchronous>, transform_indices = @transform_0, window_bounds = array<i64: 8, 128>}, {transform_indices = @transform_1, window_bounds = array<i64: 128, 128>}, {transform_indices = @transform_2, window_bounds = array<i64: 3, 128>}, {transform_indices = @transform_3, window_bounds = array<i64: 8, 128>}]} {
    %c0 = arith.constant 0 : index
    %c0_0 = arith.constant 0 : index
    %0 = vector.load %arg1[%c0, %c0_0] : memref<8x128xbf16, #tpu.memory_space<vmem>>, vector<8x128xbf16>
    %c0_1 = arith.constant 0 : index
    %c0_2 = arith.constant 0 : index
    %1 = vector.load %arg2[%c0_1, %c0_2] : memref<128x128xbf16, #tpu.memory_space<vmem>>, vector<128x128xbf16>
    %cst = arith.constant dense<0.000000e+00> : vector<8x128xf32>
    %2 = tpu.matmul %0, %1, %cst {dimension_numbers = #tpu.dot_dimension_numbers<[1], [0], [0], [1], [0, 0, 1, 1], [], []>} : vector<8x128xbf16>, vector<128x128xbf16>, vector<8x128xf32> -> vector<8x128xf32>
    %c0_3 = arith.constant 0 : index
    %c0_4 = arith.constant 0 : index
    %3 = vector.load %arg3[%c0_3, %c0_4] : memref<3x128xf32, #tpu.memory_space<vmem>>, vector<1x128xf32>
    %4 = vector.broadcast %3 : vector<1x128xf32> to vector<8x128xf32>
    %5 = arith.addf %2, %4 : vector<8x128xf32>
    %cst_5 = arith.constant 0.000000e+00 : f32
    %6 = vector.broadcast %cst_5 : f32 to vector<8x128xf32>
    %7 = arith.maximumf %5, %6 : vector<8x128xf32>
    %cst_6 = arith.constant dense<0.000000e+00> : vector<128xf32>
    %8 = vector.multi_reduction <add>, %7, %cst_6 [0] : vector<8x128xf32> to vector<128xf32>
    %9 = vector.shape_cast %8 : vector<128xf32> to vector<1x128xf32>
    %cst_7 = arith.constant 8.000000e+00 : f32
    %10 = vector.broadcast %cst_7 : f32 to vector<1x128xf32>
    %11 = arith.divf %9, %10 : vector<1x128xf32>
    %12 = vector.broadcast %11 : vector<1x128xf32> to vector<8x128xf32>
    %13 = arith.subf %7, %12 : vector<8x128xf32>
    %14 = arith.mulf %13, %13 : vector<8x128xf32>
    %cst_8 = arith.constant dense<0.000000e+00> : vector<128xf32>
    %15 = vector.multi_reduction <add>, %14, %cst_8 [0] : vector<8x128xf32> to vector<128xf32>
    %16 = vector.shape_cast %15 : vector<128xf32> to vector<1x128xf32>
    %cst_9 = arith.constant 8.000000e+00 : f32
    %17 = vector.broadcast %cst_9 : f32 to vector<1x128xf32>
    %18 = arith.divf %16, %17 : vector<1x128xf32>
    %c1 = arith.constant 1 : index
    %c0_10 = arith.constant 0 : index
    %19 = vector.load %arg3[%c1, %c0_10] : memref<3x128xf32, #tpu.memory_space<vmem>>, vector<1x128xf32>
    %cst_11 = arith.constant 9.99999974E-6 : f32
    %20 = vector.broadcast %cst_11 : f32 to vector<1x128xf32>
    %21 = arith.addf %18, %20 : vector<1x128xf32>
    %22 = math.rsqrt %21 : vector<1x128xf32>
    %23 = arith.mulf %19, %22 : vector<1x128xf32>
    %c2 = arith.constant 2 : index
    %c0_12 = arith.constant 0 : index
    %24 = vector.load %arg3[%c2, %c0_12] : memref<3x128xf32, #tpu.memory_space<vmem>>, vector<1x128xf32>
    %25 = arith.mulf %11, %23 : vector<1x128xf32>
    %26 = arith.subf %24, %25 : vector<1x128xf32>
    %27 = vector.broadcast %23 : vector<1x128xf32> to vector<8x128xf32>
    %28 = arith.mulf %7, %27 : vector<8x128xf32>
    %29 = vector.broadcast %26 : vector<1x128xf32> to vector<8x128xf32>
    %30 = arith.addf %28, %29 : vector<8x128xf32>
    %31 = arith.truncf %30 : vector<8x128xf32> to vector<8x128xbf16>
    %c0_13 = arith.constant 0 : index
    %c0_14 = arith.constant 0 : index
    %32 = vector.load %arg4[%c0_13, %c0_14] : memref<8x128xbf16, #tpu.memory_space<vmem>>, vector<8x128xbf16>
    tpu.vector_store %arg4[%c0_13, %c0_14], %31 {strides = array<i32>} : memref<8x128xbf16, #tpu.memory_space<vmem>>, vector<8x128xbf16>,
    return
  }
  func.func @transform_0(%arg0: i32) -> (i32, i32) {
    %c0_i32 = arith.constant 0 : i32
    %c0_i32_0 = arith.constant 0 : i32
    %c0_i32_1 = arith.constant 0 : i32
    return %c0_i32, %c0_i32_0 : i32, i32
  }
  func.func @transform_1(%arg0: i32) -> (i32, i32) {
    %c0_i32 = arith.constant 0 : i32
    %c0_i32_0 = arith.constant 0 : i32
    return %c0_i32, %arg0 : i32, i32
  }
  func.func @transform_2(%arg0: i32) -> (i32, i32) {
    %c0_i32 = arith.constant 0 : i32
    %c0_i32_0 = arith.constant 0 : i32
    return %c0_i32, %arg0 : i32, i32
  }
  func.func @transform_3(%arg0: i32) -> (i32, i32) {
    %c0_i32 = arith.constant 0 : i32
    %c0_i32_0 = arith.constant 0 : i32
    return %c0_i32, %arg0 : i32, i32
  }
}

</mosaic_0001>

<llo_original>
// kernel: tpu_custom_call.1
$region0: #{tpu_custom_call.1}
  #allocation0 [shape = 'u32[]', space=smem, size = 0x4, offset = 0x4, fixed_abs, tag = 'smem constant byte address 0x4 - core index']
  #allocation1 [shape = 'u32[72,128]{1,0:T(1,128)}', space=vmem, size = 0x9000, scoped, tag = 'internal scratch']
  %s0 = inlined_call_operand.hbm [shape: bf16[8,128], index: 0, kind: input, shape index: {}]
  %s1 = inlined_call_operand.hbm [shape: bf16[128,128], index: 1, kind: input, shape index: {}]
  %s2 = inlined_call_operand.hbm [shape: f32[3,128], index: 2, kind: input, shape index: {}]
  %s3 = inlined_call_operand.hbm [shape: bf16[8,128], index: 3, kind: output, shape index: {}]
  %s4 = sld [smem:[#allocation0]]
  $region34: #{tpu_custom_call.1} parent=0
    _
  %s6 = ssub.s32 1, %s4
  %s7 = scalar_select 0, %s6, %s4
  $region1: #{tpu_custom_call.1} parent=0
    #allocation2 [shape = 'u8[2048]{0}', space=vmem, size = 0x800, scoped, tag = 'input window, operand 0, single buffered']
    #allocation3 [shape = 's32[1]{0}', space=sflag, size = 0x4, scoped, tag = 'scoped memory for tpu_custom_call.1']
    #allocation4 [shape = 's32[1]{0}', space=sflag, size = 0x4, scoped, tag = 'scoped memory for tpu_custom_call.1']
    #allocation5 [shape = 'u8[32768]{0}', space=vmem, size = 0x8000, scoped, tag = 'input window, operand 1, single buffered']
    #allocation6 [shape = 's32[1]{0}', space=sflag, size = 0x4, scoped, tag = 'scoped memory for tpu_custom_call.1']
    #allocation7 [shape = 'u8[2048]{0}', space=vmem, size = 0x800, scoped, tag = 'input window, operand 2, single buffered']
    #allocation8 [shape = 'u8[2048]{0}', space=vmem, size = 0x800, scoped, tag = 'output window, operand 0, single buffered']
    %8 = vsyncpa [#allocation3], 0
    %9 = vsyncpa [#allocation6], 0
    %10 = vsyncpa [#allocation4], 0
    // Predicated region
    $region2: #{tpu_custom_call.1} parent=1 // pred_check
      _
    $region3: #{tpu_custom_call.1} parent=1 // pred_check_branch
      %12 = sbr.rel (0) target = $region5
    $region4: #{tpu_custom_call.1} parent=1 // pred_region
      %14 = vsyncadd [#allocation3], 0
      %s16 = sshll.u32 %s0, 4
      %s17 = int_to_ptr.hbm [resolvable:$true] %s16
      %s18 = sshll.u32 [#allocation2], 4
      %s19 = int_to_ptr.vmem [resolvable:$true] %s18
      %21 = dma.hbm_to_vmem [thread:$0]  %s17, 64, %s19, [#allocation3]
    $region5: #{tpu_custom_call.1} parent=1 // pred_fallthru
      _
    // Predicated region
    $region6: #{tpu_custom_call.1} parent=1 // pred_check
      _
    $region7: #{tpu_custom_call.1} parent=1 // pred_check_branch
      %23 = sbr.rel (0) target = $region9
    $region8: #{tpu_custom_call.1} parent=1 // pred_region
      %25 = vsyncadd [#allocation6], 0
      %s26 = sshll.u32 %s1, 4
      %s27 = int_to_ptr.hbm [resolvable:$true] %s26
      %s28 = sshll.u32 [#allocation5], 4
      %s29 = int_to_ptr.vmem [resolvable:$true] %s28
      %34 = dma.hbm_to_vmem [thread:$0]  %s27, 1024, %s29, [#allocation6], 64, 64, 4
    $region9: #{tpu_custom_call.1} parent=1 // pred_fallthru
      _
    // Predicated region
    $region10: #{tpu_custom_call.1} parent=1 // pred_check
      _
    $region11: #{tpu_custom_call.1} parent=1 // pred_check_branch
      %36 = sbr.rel (0) target = $region13
    $region12: #{tpu_custom_call.1} parent=1 // pred_region
      %38 = vsyncadd [#allocation6], 0
      %s40 = sshll.u32 %s2, 4
      %s41 = int_to_ptr.hbm [resolvable:$true] %s40
      %s42 = sshll.u32 [#allocation7], 4
      %s43 = int_to_ptr.vmem [resolvable:$true] %s42
      %45 = dma.hbm_to_vmem [thread:$0]  %s41, 64, %s43, [#allocation6]
    $region13: #{tpu_custom_call.1} parent=1 // pred_fallthru
      _
    // Predicated region
    $region14: #{tpu_custom_call.1} parent=1 // pred_check
      _
    $region15: #{tpu_custom_call.1} parent=1 // pred_check_branch
      %47 = sbr.rel (0) target = $region17
    $region16: #{tpu_custom_call.1} parent=1 // pred_region
      %49 = dma.done [#allocation3], 64
    $region17: #{tpu_custom_call.1} parent=1 // pred_fallthru
      _
    // Predicated region
    $region18: #{tpu_custom_call.1} parent=1 // pred_check
      _
    $region19: #{tpu_custom_call.1} parent=1 // pred_check_branch
      %51 = sbr.rel (0) target = $region21
    $region20: #{tpu_custom_call.1} parent=1 // pred_region
      %53 = dma.done [#allocation6], 1024
    $region21: #{tpu_custom_call.1} parent=1 // pred_fallthru
      _
    // Predicated region
    $region22: #{tpu_custom_call.1} parent=1 // pred_check
      _
    $region23: #{tpu_custom_call.1} parent=1 // pred_check_branch
      %55 = sbr.rel (0) target = $region25
    $region24: #{tpu_custom_call.1} parent=1 // pred_region
      %57 = dma.done [#allocation6], 64
    $region25: #{tpu_custom_call.1} parent=1 // pred_fallthru
      _
    %v58 = vld [vmem:[#allocation2] sm:$0xf]
    %v59 = vld [vmem:[#allocation5] sm:$0xf]
    %v60 = vld [vmem:[#allocation5 + $0x4] sm:$0xf]
    %v61 = vld [vmem:[#allocation5 + $0x8] sm:$0xf]
    %v62 = vld [vmem:[#allocation5 + $0xc] sm:$0xf]
    %v63 = vld [vmem:[#allocation5 + $0x10] sm:$0xf]
    %v64 = vld [vmem:[#allocation5 + $0x14] sm:$0xf]
    %v65 = vld [vmem:[#allocation5 + $0x18] sm:$0xf]
    %v66 = vld [vmem:[#allocation5 + $0x1c] sm:$0xf]
    %v67 = vld [vmem:[#allocation5 + $0x20] sm:$0xf]
    %v68 = vld [vmem:[#allocation5 + $0x24] sm:$0xf]
    %v69 = vld [vmem:[#allocation5 + $0x28] sm:$0xf]
    %v70 = vld [vmem:[#allocation5 + $0x2c] sm:$0xf]
    %v71 = vld [vmem:[#allocation5 + $0x30] sm:$0xf]
    %v72 = vld [vmem:[#allocation5 + $0x34] sm:$0xf]
    %v73 = vld [vmem:[#allocation5 + $0x38] sm:$0xf]
    %v74 = vld [vmem:[#allocation5 + $0x3c] sm:$0xf]
    %v75 = vld [vmem:[#allocation7] sm:$0x1]
    %v76 = vperm.slane %v75, 0
    %v93 = vunpack.c.l.b16 %v59
    %v94 = vunpack.c.l.b16 %v60
    %v95 = vunpack.c.l.b16 %v61
    %v96 = vunpack.c.l.b16 %v62
    %v97 = vunpack.c.l.b16 %v63
    %v98 = vunpack.c.l.b16 %v64
    %v99 = vunpack.c.l.b16 %v65
    %v100 = vunpack.c.l.b16 %v66
    %v101 = vunpack.c.l.b16 %v67
    %v102 = vunpack.c.l.b16 %v68
    %v103 = vunpack.c.l.b16 %v69
    %v104 = vunpack.c.l.b16 %v70
    %v105 = vunpack.c.l.b16 %v71
    %v106 = vunpack.c.l.b16 %v72
    %v107 = vunpack.c.l.b16 %v73
    %v108 = vunpack.c.l.b16 %v74
    %v109 = vpack.c.b16 %v94, %v93
    %v110 = vpack.c.b16 %v96, %v95
    %v111 = vpack.c.b16 %v98, %v97
    %v112 = vpack.c.b16 %v100, %v99
    %v113 = vpack.c.b16 %v102, %v101
    %v114 = vpack.c.b16 %v104, %v103
    %v115 = vpack.c.b16 %v106, %v105
    %v116 = vpack.c.b16 %v108, %v107
    %125 = vmatpush.bf16.msra.mxu0 %v116
    %126 = vmatpush.bf16.msra.mxu0 %v115
    %127 = vmatpush.bf16.msra.mxu0 %v114
    %128 = vmatpush.bf16.msra.mxu0 %v113
    %129 = vmatpush.bf16.msra.mxu0 %v112
    %130 = vmatpush.bf16.msra.mxu0 %v111
    %131 = vmatpush.bf16.msra.mxu0 %v110
    %132 = vmatpush.bf16.msra.mxu0 %v109
    %133 = vmatmul.bf16.gmra.mxu0 %v58
    %v134 = vpop.f32.mrf.mxu0
    %v135 = vadd.f32 %v76, %v134
    %v136 = vpop.f32.mrf.mxu0
    %137 = vdwg.mxu0
    %v138 = vmax.f32 %v135, 0.0
    %v139 = vrot.slane %v138, 4
    %v140 = vadd.f32 %v138, %v139
    %v141 = vrot.slane %v140, 2
    %v142 = vadd.f32 %v140, %v141
    %v143 = vrot.slane %v142, 1
    %v144 = vadd.f32 %v142, %v143
    %v145 = vrcp.pop 8.0
    %v146 = vmul.f32 8.0, %v145
    %v147 = vsub.f32 1.0, %v146
    %v148 = vmul.f32 %v145, %v147
    %v149 = vadd.f32 %v145, %v148
    %vm150 = vweird.f32 %v145
    %v151 = vsel %vm150, %v145, %v149
    %v152 = vmul.f32 %v144, %v151
    %v153 = vsub.f32 %v138, %v152
    %v154 = vmul.f32 %v153, %v153
    %v155 = vrot.slane %v154, 4
    %v156 = vadd.f32 %v154, %v155
    %v157 = vrot.slane %v156, 2
    %v158 = vadd.f32 %v156, %v157
    %v159 = vrot.slane %v158, 1
    %v160 = vadd.f32 %v158, %v159
    %v161 = vmul.f32 %v160, %v151
    %v162 = vld [vmem:[#allocation7 + $0x1] sm:$0x1]
    %v163 = vadd.f32 %v161, 1e-05
    %v164 = vrsqrt.pop %v163
    %v165 = vmul.f32 %v164, %v163
    %v166 = vmul.f32 %v165, %v164
    %v167 = vmul.f32 0.5, %v166
    %v168 = vsub.f32 1.5, %v167
    %v169 = vmul.f32 %v164, %v168
    %vm170 = vweird.f32 %v163
    %vm171 = vweird.f32 %v164
    %vm172 = vmor %vm170, %vm171
    %v173 = vsel %vm172, %v164, %v169
    %v174 = vmul.f32 %v162, %v173
    %v175 = vld [vmem:[#allocation7 + $0x2] sm:$0x1]
    %v176 = vmul.f32 %v152, %v174
    %v177 = vsub.f32 %v175, %v176
    %v178 = vperm.slane %v174, 0
    %v179 = vmul.f32 %v138, %v178
    %v180 = vperm.slane %v177, 0
    %v181 = vadd.f32 %v179, %v180
    %v182 = vpack.c.bf16 %v181, %v181
    %183 = vst [vmem:[#allocation8] sm:$0xf] %v182
    // Predicated region
    $region26: #{tpu_custom_call.1} parent=1 // pred_check
      _
    $region27: #{tpu_custom_call.1} parent=1 // pred_check_branch
      %185 = sbr.rel (0) target = $region29
    $region28: #{tpu_custom_call.1} parent=1 // pred_region
      %187 = vsyncadd [#allocation4], 0
      %s189 = sshll.u32 [#allocation8], 4
      %s190 = int_to_ptr.vmem [resolvable:$true] %s189
      %s191 = sshll.u32 %s3, 4
      %s192 = int_to_ptr.hbm [resolvable:$true] %s191
      %194 = dma.vmem_to_hbm [thread:$0]  %s190, 64, %s192, [#allocation4]
    $region29: #{tpu_custom_call.1} parent=1 // pred_fallthru
      _
    // Predicated region
    $region30: #{tpu_custom_call.1} parent=1 // pred_check
      _
    $region31: #{tpu_custom_call.1} parent=1 // pred_check_branch
      %196 = sbr.rel (0) target = $region33
    $region32: #{tpu_custom_call.1} parent=1 // pred_region
      %198 = dma.done [#allocation4], 64
    $region33: #{tpu_custom_call.1} parent=1 // pred_fallthru
      _
    %199 = vsyncpa [#allocation3], 1
    %200 = vsyncpa [#allocation6], 1
    %201 = vsyncpa [#allocation4], 1

</llo_original>
